<compile_context>
chip_gen: v6e
topology: v6e:2x2x1
jax: 0.10.0
libtpu: 0.0.40
codegen_flags: <defaults>
</compile_context>

<pallas_src>
import jax
import jax.numpy as jnp
from jax.experimental import pallas as pl
from jax.experimental.pallas import tpu as pltpu

OBS_DIM = 3        # Pendulum-v1 observation_space.shape[0]
ACTION_DIM = 1     # Pendulum-v1 action_space.shape[0]
HIDDEN = 64

LANE = 128
TILE_B_MAX = 8192  # multiple of 128; sized from a ~10 MiB/step VMEM budget


def _round_up(x, m):
    return ((x + m - 1) // m) * m


def _critic_kernel(obs_ref, act_ref, w1o_ref, w1a_ref, b1_ref,
                   w2_ref, b2_ref, w3_ref, b3_ref, o_ref):
    # Transposed layout: hidden along sublanes, batch along lanes.
    xo = obs_ref[...]                                   # (obs_dim, TILE_B)
    xa = act_ref[...]                                   # (act_dim, TILE_B)

    # --- Layer 1: W1 @ [obs; act] + b1, K=4 is too small for the MXU, so do it as
    #     4 broadcast multiply-adds on the VPU (column of W1 x row of x).
    h1 = b1_ref[...]                                    # (H, 1), broadcasts over lanes
    for k in range(xo.shape[0]):                        # static obs_dim
        h1 = h1 + w1o_ref[:, k:k + 1] * xo[k:k + 1, :]
    for k in range(xa.shape[0]):                        # static action_dim
        h1 = h1 + w1a_ref[:, k:k + 1] * xa[k:k + 1, :]
    h1 = jnp.maximum(h1, 0.0)                           # relu(fc1): (H, TILE_B) f32

    # --- Layer 2: the one real matmul on the MXU, bf16 operands, f32 accumulation.
    h2 = jnp.dot(w2_ref[...], h1.astype(jnp.bfloat16),
                 preferred_element_type=jnp.float32) + b2_ref[...]
    h2 = jnp.maximum(h2, 0.0)                           # relu(fc2): (H, TILE_B) f32

    # --- Layer 3: (1, H) @ (H, TILE_B) matvec -> natively lane-dense (1, TILE_B).
    q = jnp.dot(w3_ref[...], h2, preferred_element_type=jnp.float32)
    o_ref[...] = q + b3_ref[...]                        # (1,1) bias broadcast


def critic_forward(obs, action, params):
    """obs: (B, obs_dim), action: (B, action_dim) -> (B, 1) float32."""
    w1o, w1a, b1, w2, b2, w3, b3 = params
    obs = obs.astype(jnp.float32)
    action = action.astype(jnp.float32)
    B = obs.shape[0]
    obs_dim = obs.shape[1]
    act_dim = action.shape[1]
    hidden = w2.shape[0]

    # Batch tiling (batch lives on the lane axis, so tiles are multiples of 128).
    #  - tiny batches: one 128-wide tile
    #  - mid batches: exactly 2 parallel tiles so both v7x TensorCores get work
    #  - large batches: TILE_B_MAX tiles, tail padded
    b_min = _round_up(max(B, 1), LANE)
    if b_min <= LANE:
        tile_b, b_pad = LANE, LANE
    elif b_min <= 2 * TILE_B_MAX:
        tile_b = _round_up((b_min + 1) // 2, LANE)
        b_pad = 2 * tile_b
    else:
        tile_b = TILE_B_MAX
        b_pad = _round_up(b_min, tile_b)
    num_tiles = b_pad // tile_b

    # Dim-major (transposed) inputs: lane-dense DMA blocks, padded along lanes.
    obs_t = obs.T                                       # (obs_dim, B)
    act_t = action.T                                    # (act_dim, B)
    pad = b_pad - B
    if pad:
        obs_t = jnp.pad(obs_t, ((0, 0), (0, pad)))
        act_t = jnp.pad(act_t, ((0, 0), (0, pad)))

    w2_bf16 = w2.astype(jnp.bfloat16)                   # bf16 MXU operand, halves W2 DMA

    out = pl.pallas_call(
        _critic_kernel,
        out_shape=jax.ShapeDtypeStruct((1, b_pad), jnp.float32),
        grid=(num_tiles,),
        in_specs=[
            pl.BlockSpec((obs_dim, tile_b), lambda i: (0, i)),   # obs tile (lane-dense)
            pl.BlockSpec((act_dim, tile_b), lambda i: (0, i)),   # action tile
            pl.BlockSpec((hidden, obs_dim), lambda i: (0, 0)),   # W1_obs (resident)
            pl.BlockSpec((hidden, act_dim), lambda i: (0, 0)),   # W1_act (resident)
            pl.BlockSpec((hidden, 1), lambda i: (0, 0)),         # b1
            pl.BlockSpec((hidden, hidden), lambda i: (0, 0)),    # W2 (bf16, resident)
            pl.BlockSpec((hidden, 1), lambda i: (0, 0)),         # b2
            pl.BlockSpec((1, hidden), lambda i: (0, 0)),         # W3 row
            pl.BlockSpec((1, 1), lambda i: (0, 0)),              # b3
        ],
        out_specs=pl.BlockSpec((1, tile_b), lambda i: (0, i)),   # lane-dense q row
        compiler_params=pltpu.CompilerParams(
            dimension_semantics=("parallel",),
            vmem_limit_bytes=32 * 1024 * 1024),
    )(obs_t, act_t, w1o, w1a, b1, w2_bf16, b2, w3, b3)

    return out[0, :B].reshape(B, 1)


def init_params(key, obs_dim=OBS_DIM, action_dim=ACTION_DIM, hidden=HIDDEN):
    """nn.Linear-style U(-1/sqrt(fan_in), 1/sqrt(fan_in)); torch (out, in) orientation."""
    in_dim = obs_dim + action_dim
    keys = jax.random.split(key, 6)

    def uniform(k, shape, fan_in):
        bound = 1.0 / jnp.sqrt(fan_in)
        return jax.random.uniform(k, shape, jnp.float32, -bound, bound)

    w1 = uniform(keys[0], (hidden, in_dim), in_dim)
    w1_obs, w1_act = w1[:, :obs_dim], w1[:, obs_dim:]   # split: concat fused in-kernel
    b1 = uniform(keys[1], (hidden, 1), in_dim)
    w2 = uniform(keys[2], (hidden, hidden), hidden)
    b2 = uniform(keys[3], (hidden, 1), hidden)
    w3 = uniform(keys[4], (1, hidden), hidden)           # == torch (1, 64) weight
    b3 = uniform(keys[5], (1, 1), hidden)
    return (w1_obs, w1_act, b1, w2, b2, w3, b3)


def critic_reference(obs, action, params, bf16_matmul=True):
    """Pure-JAX reference. bf16_matmul=True mirrors the kernel's bf16 layer-2 MXU dot."""
    w1o, w1a, b1, w2, b2, w3, b3 = params
    hi = jax.lax.Precision.HIGHEST
    x = jnp.concatenate([obs, action], axis=-1)
    w1 = jnp.concatenate([w1o, w1a], axis=1)
    h1 = jax.nn.relu(jnp.dot(x, w1.T, precision=hi) + b1.T)
    if bf16_matmul:
        h2 = jnp.dot(h1.astype(jnp.bfloat16), w2.T.astype(jnp.bfloat16),
                     preferred_element_type=jnp.float32) + b2.T
    else:
        h2 = jnp.dot(h1, w2.T, precision=hi) + b2.T
    h2 = jax.nn.relu(h2)
    return jnp.dot(h2, w3.T, precision=hi) + b3


if __name__ == "__main__":
    key = jax.random.PRNGKey(0)
    k_param, k_obs, k_act = jax.random.split(key, 3)

    params = init_params(k_param)

    # Small deterministic example matching the module's forward signature.
    B = 8
    obs = jax.random.normal(k_obs, (B, OBS_DIM), jnp.float32)
    action = jax.random.normal(k_act, (B, ACTION_DIM), jnp.float32)

    q = jax.block_until_ready(critic_forward(obs, action, params))
    assert q.shape == (B, 1)
    assert jnp.allclose(q, critic_reference(obs, action, params, bf16_matmul=True),
                        atol=5e-3, rtol=5e-3)
    assert jnp.allclose(q, critic_reference(obs, action, params, bf16_matmul=False),
                        atol=5e-2, rtol=5e-2)

    # Exercise the 2-tile parallel grid + ragged-tail padding path.
    B2 = 2600
    k_obs2, k_act2 = jax.random.split(jax.random.PRNGKey(1))
    obs2 = jax.random.normal(k_obs2, (B2, OBS_DIM), jnp.float32)
    act2 = jax.random.normal(k_act2, (B2, ACTION_DIM), jnp.float32)
    q2 = jax.block_until_ready(critic_forward(obs2, act2, params))
    assert q2.shape == (B2, 1)
    assert jnp.allclose(q2, critic_reference(obs2, act2, params, bf16_matmul=True),
                        atol=5e-3, rtol=5e-3)
    assert jnp.allclose(q2, critic_reference(obs2, act2, params, bf16_matmul=False),
                        atol=5e-2, rtol=5e-2)

    print("KERNEL_OK")
</pallas_src>

<mosaic_0001>
module attributes {stable_mosaic.version = 11 : i64} {
  func.func @_critic_kernel(%arg0: i32, %arg1: memref<3x128xf32, #tpu.memory_space<vmem>>, %arg2: memref<1x128xf32, #tpu.memory_space<vmem>>, %arg3: memref<64x3xf32, #tpu.memory_space<vmem>>, %arg4: memref<64x1xf32, #tpu.memory_space<vmem>>, %arg5: memref<64x1xf32, #tpu.memory_space<vmem>>, %arg6: memref<64x64xbf16, #tpu.memory_space<vmem>>, %arg7: memref<64x1xf32, #tpu.memory_space<vmem>>, %arg8: memref<1x64xf32, #tpu.memory_space<vmem>>, %arg9: memref<1x1xf32, #tpu.memory_space<vmem>>, %arg10: memref<1x128xf32, #tpu.memory_space<vmem>>) attributes {dimension_semantics = [#tpu.dimension_semantics<parallel>], iteration_bounds = array<i64: 1>, scalar_prefetch = 0 : i64, scratch_operands = 0 : i64, tpu.core_type = #tpu.core_type<tc>, window_params = [{transform_indices = @transform_0, window_bounds = array<i64: 3, 128>}, {transform_indices = @transform_1, window_bounds = array<i64: 1, 128>}, {pipeline_mode = #tpu.pipeline_mode<synchronous>, transform_indices = @transform_2, window_bounds = array<i64: 64, 3>}, {pipeline_mode = #tpu.pipeline_mode<synchronous>, transform_indices = @transform_3, window_bounds = array<i64: 64, 1>}, {pipeline_mode = #tpu.pipeline_mode<synchronous>, transform_indices = @transform_4, window_bounds = array<i64: 64, 1>}, {pipeline_mode = #tpu.pipeline_mode<synchronous>, transform_indices = @transform_5, window_bounds = array<i64: 64, 64>}, {pipeline_mode = #tpu.pipeline_mode<synchronous>, transform_indices = @transform_6, window_bounds = array<i64: 64, 1>}, {pipeline_mode = #tpu.pipeline_mode<synchronous>, transform_indices = @transform_7, window_bounds = array<i64: 1, 64>}, {pipeline_mode = #tpu.pipeline_mode<synchronous>, transform_indices = @transform_8, window_bounds = array<i64: 1, 1>}, {transform_indices = @transform_9, window_bounds = array<i64: 1, 128>}]} {
    %c0 = arith.constant 0 : index
    %c0_0 = arith.constant 0 : index
    %0 = vector.load %arg1[%c0, %c0_0] : memref<3x128xf32, #tpu.memory_space<vmem>>, vector<3x128xf32>
    %c0_1 = arith.constant 0 : index
    %c0_2 = arith.constant 0 : index
    %1 = vector.load %arg2[%c0_1, %c0_2] : memref<1x128xf32, #tpu.memory_space<vmem>>, vector<1x128xf32>
    %c0_3 = arith.constant 0 : index
    %c0_4 = arith.constant 0 : index
    %2 = vector.load %arg5[%c0_3, %c0_4] : memref<64x1xf32, #tpu.memory_space<vmem>>, vector<64x1xf32>
    %c0_5 = arith.constant 0 : index
    %c0_6 = arith.constant 0 : index
    %3 = vector.load %arg3[%c0_5, %c0_6] : memref<64x3xf32, #tpu.memory_space<vmem>>, vector<64x1xf32>
    %4 = vector.extract_strided_slice %0 {offsets = [0, 0], sizes = [1, 128], strides = [1, 1]} : vector<3x128xf32> to vector<1x128xf32>
    %5 = vector.broadcast %3 : vector<64x1xf32> to vector<64x128xf32>
    %6 = vector.broadcast %4 : vector<1x128xf32> to vector<64x128xf32>
    %7 = arith.mulf %5, %6 : vector<64x128xf32>
    %8 = vector.broadcast %2 : vector<64x1xf32> to vector<64x128xf32>
    %9 = arith.addf %8, %7 : vector<64x128xf32>
    %c0_7 = arith.constant 0 : index
    %c1 = arith.constant 1 : index
    %10 = vector.load %arg3[%c0_7, %c1] : memref<64x3xf32, #tpu.memory_space<vmem>>, vector<64x1xf32>
    %11 = vector.extract_strided_slice %0 {offsets = [1, 0], sizes = [1, 128], strides = [1, 1]} : vector<3x128xf32> to vector<1x128xf32>
    %12 = vector.broadcast %10 : vector<64x1xf32> to vector<64x128xf32>
    %13 = vector.broadcast %11 : vector<1x128xf32> to vector<64x128xf32>
    %14 = arith.mulf %12, %13 : vector<64x128xf32>
    %15 = arith.addf %9, %14 : vector<64x128xf32>
    %c0_8 = arith.constant 0 : index
    %c2 = arith.constant 2 : index
    %16 = vector.load %arg3[%c0_8, %c2] : memref<64x3xf32, #tpu.memory_space<vmem>>, vector<64x1xf32>
    %17 = vector.extract_strided_slice %0 {offsets = [2, 0], sizes = [1, 128], strides = [1, 1]} : vector<3x128xf32> to vector<1x128xf32>
    %18 = vector.broadcast %16 : vector<64x1xf32> to vector<64x128xf32>
    %19 = vector.broadcast %17 : vector<1x128xf32> to vector<64x128xf32>
    %20 = arith.mulf %18, %19 : vector<64x128xf32>
    %21 = arith.addf %15, %20 : vector<64x128xf32>
    %c0_9 = arith.constant 0 : index
    %c0_10 = arith.constant 0 : index
    %22 = vector.load %arg4[%c0_9, %c0_10] : memref<64x1xf32, #tpu.memory_space<vmem>>, vector<64x1xf32>
    %23 = vector.broadcast %22 : vector<64x1xf32> to vector<64x128xf32>
    %24 = vector.broadcast %1 : vector<1x128xf32> to vector<64x128xf32>
    %25 = arith.mulf %23, %24 : vector<64x128xf32>
    %26 = arith.addf %21, %25 : vector<64x128xf32>
    %cst = arith.constant 0.000000e+00 : f32
    %27 = vector.broadcast %cst : f32 to vector<64x128xf32>
    %28 = arith.maximumf %26, %27 : vector<64x128xf32>
    %c0_11 = arith.constant 0 : index
    %c0_12 = arith.constant 0 : index
    %29 = vector.load %arg6[%c0_11, %c0_12] : memref<64x64xbf16, #tpu.memory_space<vmem>>, vector<64x64xbf16>
    %30 = arith.truncf %28 : vector<64x128xf32> to vector<64x128xbf16>
    %cst_13 = arith.constant dense<0.000000e+00> : vector<64x128xf32>
    %31 = tpu.matmul %29, %30, %cst_13 {dimension_numbers = #tpu.dot_dimension_numbers<[1], [0], [0], [1], [0, 0, 1, 1], [], []>} : vector<64x64xbf16>, vector<64x128xbf16>, vector<64x128xf32> -> vector<64x128xf32>
    %c0_14 = arith.constant 0 : index
    %c0_15 = arith.constant 0 : index
    %32 = vector.load %arg7[%c0_14, %c0_15] : memref<64x1xf32, #tpu.memory_space<vmem>>, vector<64x1xf32>
    %33 = vector.broadcast %32 : vector<64x1xf32> to vector<64x128xf32>
    %34 = arith.addf %31, %33 : vector<64x128xf32>
    %cst_16 = arith.constant 0.000000e+00 : f32
    %35 = vector.broadcast %cst_16 : f32 to vector<64x128xf32>
    %36 = arith.maximumf %34, %35 : vector<64x128xf32>
    %c0_17 = arith.constant 0 : index
    %c0_18 = arith.constant 0 : index
    %37 = vector.load %arg8[%c0_17, %c0_18] : memref<1x64xf32, #tpu.memory_space<vmem>>, vector<1x64xf32>
    %cst_19 = arith.constant dense<0.000000e+00> : vector<1x128xf32>
    %38 = tpu.matmul %37, %36, %cst_19 {dimension_numbers = #tpu.dot_dimension_numbers<[1], [0], [0], [1], [0, 0, 1, 1], [], []>} : vector<1x64xf32>, vector<64x128xf32>, vector<1x128xf32> -> vector<1x128xf32>
    %c0_20 = arith.constant 0 : index
    %c0_21 = arith.constant 0 : index
    %39 = vector.load %arg9[%c0_20, %c0_21] : memref<1x1xf32, #tpu.memory_space<vmem>>, vector<1x1xf32>
    %40 = vector.broadcast %39 : vector<1x1xf32> to vector<1x128xf32>
    %41 = arith.addf %38, %40 : vector<1x128xf32>
    %c0_22 = arith.constant 0 : index
    %c0_23 = arith.constant 0 : index
    %42 = vector.load %arg10[%c0_22, %c0_23] : memref<1x128xf32, #tpu.memory_space<vmem>>, vector<1x128xf32>
    tpu.vector_store %arg10[%c0_22, %c0_23], %41 {strides = array<i32>} : memref<1x128xf32, #tpu.memory_space<vmem>>, vector<1x128xf32>,
    return
  }
  func.func @transform_0(%arg0: i32) -> (i32, i32) {
    %c0_i32 = arith.constant 0 : i32
    %c0_i32_0 = arith.constant 0 : i32
    return %c0_i32, %arg0 : i32, i32
  }
  func.func @transform_1(%arg0: i32) -> (i32, i32) {
    %c0_i32 = arith.constant 0 : i32
    %c0_i32_0 = arith.constant 0 : i32
    return %c0_i32, %arg0 : i32, i32
  }
  func.func @transform_2(%arg0: i32) -> (i32, i32) {
    %c0_i32 = arith.constant 0 : i32
    %c0_i32_0 = arith.constant 0 : i32
    %c0_i32_1 = arith.constant 0 : i32
    return %c0_i32, %c0_i32_0 : i32, i32
  }
  func.func @transform_3(%arg0: i32) -> (i32, i32) {
    %c0_i32 = arith.constant 0 : i32
    %c0_i32_0 = arith.constant 0 : i32
    %c0_i32_1 = arith.constant 0 : i32
    return %c0_i32, %c0_i32_0 : i32, i32
  }
  func.func @transform_4(%arg0: i32) -> (i32, i32) {
    %c0_i32 = arith.constant 0 : i32
    %c0_i32_0 = arith.constant 0 : i32
    %c0_i32_1 = arith.constant 0 : i32
    return %c0_i32, %c0_i32_0 : i32, i32
  }
  func.func @transform_5(%arg0: i32) -> (i32, i32) {
    %c0_i32 = arith.constant 0 : i32
    %c0_i32_0 = arith.constant 0 : i32
    %c0_i32_1 = arith.constant 0 : i32
    return %c0_i32, %c0_i32_0 : i32, i32
  }
  func.func @transform_6(%arg0: i32) -> (i32, i32) {
    %c0_i32 = arith.constant 0 : i32
    %c0_i32_0 = arith.constant 0 : i32
    %c0_i32_1 = arith.constant 0 : i32
    return %c0_i32, %c0_i32_0 : i32, i32
  }
  func.func @transform_7(%arg0: i32) -> (i32, i32) {
    %c0_i32 = arith.constant 0 : i32
    %c0_i32_0 = arith.constant 0 : i32
    %c0_i32_1 = arith.constant 0 : i32
    return %c0_i32, %c0_i32_0 : i32, i32
  }
  func.func @transform_8(%arg0: i32) -> (i32, i32) {
    %c0_i32 = arith.constant 0 : i32
    %c0_i32_0 = arith.constant 0 : i32
    %c0_i32_1 = arith.constant 0 : i32
    return %c0_i32, %c0_i32_0 : i32, i32
  }
  func.func @transform_9(%arg0: i32) -> (i32, i32) {
    %c0_i32 = arith.constant 0 : i32
    %c0_i32_0 = arith.constant 0 : i32
    return %c0_i32, %arg0 : i32, i32
  }
}

</mosaic_0001>

<llo_original>
// kernel: tpu_custom_call.1
$region0: #{tpu_custom_call.1}
  #allocation0 [shape = 'u32[]', space=smem, size = 0x4, offset = 0x4, fixed_abs, tag = 'smem constant byte address 0x4 - core index']
  #allocation1 [shape = 'u32[144,128]{1,0:T(1,128)}', space=vmem, size = 0x12000, scoped, tag = 'internal scratch']
  #allocation2 [shape = 'f32[1,1]{1,0:T(1,128)S(1)}', space=vmem, size = 0x200, scoped, tag = 'scoped memory for tpu_custom_call.1']
  %s0 = inlined_call_operand.vmem [shape: f32[3,128], index: 0, kind: input, shape index: {}]
  %s1 = inlined_call_operand.vmem [shape: f32[1,128], index: 1, kind: input, shape index: {}]
  %s2 = inlined_call_operand.vmem [shape: f32[64,3], index: 2, kind: input, shape index: {}]
  %s3 = inlined_call_operand.vmem [shape: f32[64,1], index: 3, kind: input, shape index: {}]
  %s4 = inlined_call_operand.vmem [shape: f32[64,1], index: 4, kind: input, shape index: {}]
  %s5 = inlined_call_operand.vmem [shape: bf16[64,64], index: 5, kind: input, shape index: {}]
  %s6 = inlined_call_operand.vmem [shape: f32[64,1], index: 6, kind: input, shape index: {}]
  %s7 = inlined_call_operand.vmem [shape: f32[1,64], index: 7, kind: input, shape index: {}]
  %s8 = inlined_call_operand.<no memory space> [shape: f32[1,1], index: 8, kind: input, shape index: {}]
  %s9 = inlined_call_operand.hbm [shape: f32[1,128], index: 9, kind: output, shape index: {}]
  %s10 = sld [smem:[#allocation0]]
  $region46: #{tpu_custom_call.1} parent=0
    _
  %s12 = ssub.s32 1, %s10
  %s13 = scalar_select 0, %s12, %s10
  %v14 = vstv %s8
  %15 = vst [vmem:[#allocation2] sm:$0x1] %v14
  $region1: #{tpu_custom_call.1} parent=0
    #allocation3 [shape = 'u8[512]{0}', space=vmem, size = 0x400, scoped, tag = 'output window, operand 0, single buffered']
    #allocation4 [shape = 's32[1]{0}', space=sflag, size = 0x4, scoped, tag = 'scoped memory for tpu_custom_call.1']
    %16 = vsyncpa [#allocation4], 0
    // Predicated region
    $region2: #{tpu_custom_call.1} parent=1 // pred_check
      _
    $region3: #{tpu_custom_call.1} parent=1 // pred_check_branch
      %18 = sbr.rel (0) target = $region5
    $region4: #{tpu_custom_call.1} parent=1 // pred_region
      _
    $region5: #{tpu_custom_call.1} parent=1 // pred_fallthru
      _
    // Predicated region
    $region6: #{tpu_custom_call.1} parent=1 // pred_check
      _
    $region7: #{tpu_custom_call.1} parent=1 // pred_check_branch
      %20 = sbr.rel (0) target = $region9
    $region8: #{tpu_custom_call.1} parent=1 // pred_region
      _
    $region9: #{tpu_custom_call.1} parent=1 // pred_fallthru
      _
    // Predicated region
    $region10: #{tpu_custom_call.1} parent=1 // pred_check
      _
    $region11: #{tpu_custom_call.1} parent=1 // pred_check_branch
      %22 = sbr.rel (0) target = $region13
    $region12: #{tpu_custom_call.1} parent=1 // pred_region
      _
    $region13: #{tpu_custom_call.1} parent=1 // pred_fallthru
      _
    // Predicated region
    $region14: #{tpu_custom_call.1} parent=1 // pred_check
      _
    $region15: #{tpu_custom_call.1} parent=1 // pred_check_branch
      %24 = sbr.rel (0) target = $region17
    $region16: #{tpu_custom_call.1} parent=1 // pred_region
      _
    $region17: #{tpu_custom_call.1} parent=1 // pred_fallthru
      _
    // Predicated region
    $region18: #{tpu_custom_call.1} parent=1 // pred_check
      _
    $region19: #{tpu_custom_call.1} parent=1 // pred_check_branch
      %26 = sbr.rel (0) target = $region21
    $region20: #{tpu_custom_call.1} parent=1 // pred_region
      _
    $region21: #{tpu_custom_call.1} parent=1 // pred_fallthru
      _
    // Predicated region
    $region22: #{tpu_custom_call.1} parent=1 // pred_check
      _
    $region23: #{tpu_custom_call.1} parent=1 // pred_check_branch
      %28 = sbr.rel (0) target = $region25
    $region24: #{tpu_custom_call.1} parent=1 // pred_region
      _
    $region25: #{tpu_custom_call.1} parent=1 // pred_fallthru
      _
    // Predicated region
    $region26: #{tpu_custom_call.1} parent=1 // pred_check
      _
    $region27: #{tpu_custom_call.1} parent=1 // pred_check_branch
      %30 = sbr.rel (0) target = $region29
    $region28: #{tpu_custom_call.1} parent=1 // pred_region
      _
    $region29: #{tpu_custom_call.1} parent=1 // pred_fallthru
      _
    // Predicated region
    $region30: #{tpu_custom_call.1} parent=1 // pred_check
      _
    $region31: #{tpu_custom_call.1} parent=1 // pred_check_branch
      %32 = sbr.rel (0) target = $region33
    $region32: #{tpu_custom_call.1} parent=1 // pred_region
      _
    $region33: #{tpu_custom_call.1} parent=1 // pred_fallthru
      _
    // Predicated region
    $region34: #{tpu_custom_call.1} parent=1 // pred_check
      _
    $region35: #{tpu_custom_call.1} parent=1 // pred_check_branch
      %34 = sbr.rel (0) target = $region37
    $region36: #{tpu_custom_call.1} parent=1 // pred_region
      _
    $region37: #{tpu_custom_call.1} parent=1 // pred_fallthru
      _
    %v36 = vld [vmem:[%s0] sm:$0x7]
    %v37 = vld [vmem:[%s1] sm:$0x1]
    %v38 = vld [vmem:[%s4] sm:$0xff]
    %v39 = vld [vmem:[%s4 + $0x8] sm:$0xff]
    %v40 = vld [vmem:[%s4 + $0x10] sm:$0xff]
    %v41 = vld [vmem:[%s4 + $0x18] sm:$0xff]
    %v42 = vld [vmem:[%s4 + $0x20] sm:$0xff]
    %v43 = vld [vmem:[%s4 + $0x28] sm:$0xff]
    %v44 = vld [vmem:[%s4 + $0x30] sm:$0xff]
    %v45 = vld [vmem:[%s4 + $0x38] sm:$0xff]
    %v46 = vld [vmem:[%s2] sm:$0xff]
    %v47 = vld [vmem:[%s2 + $0x8] sm:$0xff]
    %v48 = vld [vmem:[%s2 + $0x10] sm:$0xff]
    %v49 = vld [vmem:[%s2 + $0x18] sm:$0xff]
    %v50 = vld [vmem:[%s2 + $0x20] sm:$0xff]
    %v51 = vld [vmem:[%s2 + $0x28] sm:$0xff]
    %v52 = vld [vmem:[%s2 + $0x30] sm:$0xff]
    %v53 = vld [vmem:[%s2 + $0x38] sm:$0xff]
    %55 = vset.pattern.permute.xlu0 0
    %56 = vperm.xlu0 %55, %v46
    %v57 = vpop.permute.xlu0 %56
    %60 = vset.pattern.permute.xlu0 0
    %61 = vperm.xlu0 %60, %v47
    %v62 = vpop.permute.xlu0 %61
    %65 = vset.pattern.permute.xlu0 0
    %66 = vperm.xlu0 %65, %v48
    %v67 = vpop.permute.xlu0 %66
    %70 = vset.pattern.permute.xlu0 0
    %71 = vperm.xlu0 %70, %v49
    %v72 = vpop.permute.xlu0 %71
    %75 = vset.pattern.permute.xlu0 0
    %76 = vperm.xlu0 %75, %v50
    %v77 = vpop.permute.xlu0 %76
    %80 = vset.pattern.permute.xlu0 0
    %81 = vperm.xlu0 %80, %v51
    %v82 = vpop.permute.xlu0 %81
    %85 = vset.pattern.permute.xlu0 0
    %86 = vperm.xlu0 %85, %v52
    %v87 = vpop.permute.xlu0 %86
    %90 = vset.pattern.permute.xlu0 0
    %91 = vperm.xlu0 %90, %v53
    %v92 = vpop.permute.xlu0 %91
    %v94 = vlaneseq
    %v95 = vshrl.u32 %v94, 7
    %v96 = vsub.s32 0, %v95
    %v97 = vrot.slane %v36, %v96
    %v98 = vmul.f32 %v57, %v97
    %v99 = vmul.f32 %v62, %v97
    %v100 = vmul.f32 %v67, %v97
    %v101 = vmul.f32 %v72, %v97
    %v102 = vmul.f32 %v77, %v97
    %v103 = vmul.f32 %v82, %v97
    %v104 = vmul.f32 %v87, %v97
    %v105 = vmul.f32 %v92, %v97
    %107 = vset.pattern.permute.xlu0 0
    %108 = vperm.xlu0 %107, %v38
    %v109 = vpop.permute.xlu0 %108
    %112 = vset.pattern.permute.xlu0 0
    %113 = vperm.xlu0 %112, %v39
    %v114 = vpop.permute.xlu0 %113
    %117 = vset.pattern.permute.xlu0 0
    %118 = vperm.xlu0 %117, %v40
    %v119 = vpop.permute.xlu0 %118
    %122 = vset.pattern.permute.xlu0 0
    %123 = vperm.xlu0 %122, %v41
    %v124 = vpop.permute.xlu0 %123
    %127 = vset.pattern.permute.xlu0 0
    %128 = vperm.xlu0 %127, %v42
    %v129 = vpop.permute.xlu0 %128
    %132 = vset.pattern.permute.xlu0 0
    %133 = vperm.xlu0 %132, %v43
    %v134 = vpop.permute.xlu0 %133
    %137 = vset.pattern.permute.xlu0 0
    %138 = vperm.xlu0 %137, %v44
    %v139 = vpop.permute.xlu0 %138
    %142 = vset.pattern.permute.xlu0 0
    %143 = vperm.xlu0 %142, %v45
    %v144 = vpop.permute.xlu0 %143
    %v146 = vadd.f32 %v109, %v98
    %v147 = vadd.f32 %v114, %v99
    %v148 = vadd.f32 %v119, %v100
    %v149 = vadd.f32 %v124, %v101
    %v150 = vadd.f32 %v129, %v102
    %v151 = vadd.f32 %v134, %v103
    %v152 = vadd.f32 %v139, %v104
    %v153 = vadd.f32 %v144, %v105
    %154 = vset.pattern.permute.xlu0 1
    %155 = vperm.xlu0 %154, %v46
    %v156 = vpop.permute.xlu0 %155
    %158 = vset.pattern.permute.xlu0 1
    %159 = vperm.xlu0 %158, %v47
    %v160 = vpop.permute.xlu0 %159
    %162 = vset.pattern.permute.xlu0 1
    %163 = vperm.xlu0 %162, %v48
    %v164 = vpop.permute.xlu0 %163
    %166 = vset.pattern.permute.xlu0 1
    %167 = vperm.xlu0 %166, %v49
    %v168 = vpop.permute.xlu0 %167
    %170 = vset.pattern.permute.xlu0 1
    %171 = vperm.xlu0 %170, %v50
    %v172 = vpop.permute.xlu0 %171
    %174 = vset.pattern.permute.xlu0 1
    %175 = vperm.xlu0 %174, %v51
    %v176 = vpop.permute.xlu0 %175
    %178 = vset.pattern.permute.xlu0 1
    %179 = vperm.xlu0 %178, %v52
    %v180 = vpop.permute.xlu0 %179
    %182 = vset.pattern.permute.xlu0 1
    %183 = vperm.xlu0 %182, %v53
    %v184 = vpop.permute.xlu0 %183
    %v186 = vlaneseq
    %v187 = vshrl.u32 %v186, 7
    %v188 = vsub.s32 1, %v187
    %v189 = vrot.slane %v36, %v188
    %v190 = vmul.f32 %v156, %v189
    %v191 = vmul.f32 %v160, %v189
    %v192 = vmul.f32 %v164, %v189
    %v193 = vmul.f32 %v168, %v189
    %v194 = vmul.f32 %v172, %v189
    %v195 = vmul.f32 %v176, %v189
    %v196 = vmul.f32 %v180, %v189
    %v197 = vmul.f32 %v184, %v189
    %v198 = vadd.f32 %v146, %v190
    %v199 = vadd.f32 %v147, %v191
    %v200 = vadd.f32 %v148, %v192
    %v201 = vadd.f32 %v149, %v193
    %v202 = vadd.f32 %v150, %v194
    %v203 = vadd.f32 %v151, %v195
    %v204 = vadd.f32 %v152, %v196
    %v205 = vadd.f32 %v153, %v197
    %206 = vset.pattern.permute.xlu0 2
    %207 = vperm.xlu0 %206, %v46
    %v208 = vpop.permute.xlu0 %207
    %210 = vset.pattern.permute.xlu0 2
    %211 = vperm.xlu0 %210, %v47
    %v212 = vpop.permute.xlu0 %211
    %214 = vset.pattern.permute.xlu0 2
    %215 = vperm.xlu0 %214, %v48
    %v216 = vpop.permute.xlu0 %215
    %218 = vset.pattern.permute.xlu0 2
    %219 = vperm.xlu0 %218, %v49
    %v220 = vpop.permute.xlu0 %219
    %222 = vset.pattern.permute.xlu0 2
    %223 = vperm.xlu0 %222, %v50
    %v224 = vpop.permute.xlu0 %223
    %226 = vset.pattern.permute.xlu0 2
    %227 = vperm.xlu0 %226, %v51
    %v228 = vpop.permute.xlu0 %227
    %230 = vset.pattern.permute.xlu0 2
    %231 = vperm.xlu0 %230, %v52
    %v232 = vpop.permute.xlu0 %231
    %234 = vset.pattern.permute.xlu0 2
    %235 = vperm.xlu0 %234, %v53
    %v236 = vpop.permute.xlu0 %235
    %v238 = vlaneseq
    %v239 = vshrl.u32 %v238, 7
    %v240 = vsub.s32 2, %v239
    %v241 = vrot.slane %v36, %v240
    %v242 = vmul.f32 %v208, %v241
    %v243 = vmul.f32 %v212, %v241
    %v244 = vmul.f32 %v216, %v241
    %v245 = vmul.f32 %v220, %v241
    %v246 = vmul.f32 %v224, %v241
    %v247 = vmul.f32 %v228, %v241
    %v248 = vmul.f32 %v232, %v241
    %v249 = vmul.f32 %v236, %v241
    %v250 = vadd.f32 %v198, %v242
    %v251 = vadd.f32 %v199, %v243
    %v252 = vadd.f32 %v200, %v244
    %v253 = vadd.f32 %v201, %v245
    %v254 = vadd.f32 %v202, %v246
    %v255 = vadd.f32 %v203, %v247
    %v256 = vadd.f32 %v204, %v248
    %v257 = vadd.f32 %v205, %v249
    %v258 = vld [vmem:[%s3] sm:$0xff]
    %v259 = vld [vmem:[%s3 + $0x8] sm:$0xff]
    %v260 = vld [vmem:[%s3 + $0x10] sm:$0xff]
    %v261 = vld [vmem:[%s3 + $0x18] sm:$0xff]
    %v262 = vld [vmem:[%s3 + $0x20] sm:$0xff]
    %v263 = vld [vmem:[%s3 + $0x28] sm:$0xff]
    %v264 = vld [vmem:[%s3 + $0x30] sm:$0xff]
    %v265 = vld [vmem:[%s3 + $0x38] sm:$0xff]
    %267 = vset.pattern.permute.xlu0 0
    %268 = vperm.xlu0 %267, %v258
    %v269 = vpop.permute.xlu0 %268
    %272 = vset.pattern.permute.xlu0 0
    %273 = vperm.xlu0 %272, %v259
    %v274 = vpop.permute.xlu0 %273
    %277 = vset.pattern.permute.xlu0 0
    %278 = vperm.xlu0 %277, %v260
    %v279 = vpop.permute.xlu0 %278
    %282 = vset.pattern.permute.xlu0 0
    %283 = vperm.xlu0 %282, %v261
    %v284 = vpop.permute.xlu0 %283
    %287 = vset.pattern.permute.xlu0 0
    %288 = vperm.xlu0 %287, %v262
    %v289 = vpop.permute.xlu0 %288
    %292 = vset.pattern.permute.xlu0 0
    %293 = vperm.xlu0 %292, %v263
    %v294 = vpop.permute.xlu0 %293
    %297 = vset.pattern.permute.xlu0 0
    %298 = vperm.xlu0 %297, %v264
    %v299 = vpop.permute.xlu0 %298
    %302 = vset.pattern.permute.xlu0 0
    %303 = vperm.xlu0 %302, %v265
    %v304 = vpop.permute.xlu0 %303
    %v307 = vlaneseq
    %v308 = vshrl.u32 %v307, 7
    %v309 = vsub.s32 0, %v308
    %v310 = vrot.slane %v37, %v309
    %v312 = vmul.f32 %v269, %v310
    %v313 = vmul.f32 %v274, %v310
    %v314 = vmul.f32 %v279, %v310
    %v315 = vmul.f32 %v284, %v310
    %v316 = vmul.f32 %v289, %v310
    %v317 = vmul.f32 %v294, %v310
    %v318 = vmul.f32 %v299, %v310
    %v319 = vmul.f32 %v304, %v310
    %v320 = vadd.f32 %v250, %v312
    %v321 = vadd.f32 %v251, %v313
    %v322 = vadd.f32 %v252, %v314
    %v323 = vadd.f32 %v253, %v315
    %v324 = vadd.f32 %v254, %v316
    %v325 = vadd.f32 %v255, %v317
    %v326 = vadd.f32 %v256, %v318
    %v327 = vadd.f32 %v257, %v319
    %v328 = vmax.f32 %v320, 0.0
    %v329 = vmax.f32 %v321, 0.0
    %v330 = vmax.f32 %v322, 0.0
    %v331 = vmax.f32 %v323, 0.0
    %v332 = vmax.f32 %v324, 0.0
    %v333 = vmax.f32 %v325, 0.0
    %v334 = vmax.f32 %v326, 0.0
    %v335 = vmax.f32 %v327, 0.0
    %v336 = vld [vmem:[%s5] sm:$0xf]
    %v337 = vld [vmem:[%s5 + $0x4] sm:$0xf]
    %v338 = vld [vmem:[%s5 + $0x8] sm:$0xf]
    %v339 = vld [vmem:[%s5 + $0xc] sm:$0xf]
    %v340 = vld [vmem:[%s5 + $0x10] sm:$0xf]
    %v341 = vld [vmem:[%s5 + $0x14] sm:$0xf]
    %v342 = vld [vmem:[%s5 + $0x18] sm:$0xf]
    %v343 = vld [vmem:[%s5 + $0x1c] sm:$0xf]
    %v344 = vpack.c.bf16 %v329, %v328
    %v345 = vpack.c.bf16 %v331, %v330
    %v346 = vpack.c.bf16 %v333, %v332
    %v347 = vpack.c.bf16 %v335, %v334
    %v348 = vld [vmem:[%s6] sm:$0xff]
    %v349 = vld [vmem:[%s6 + $0x8] sm:$0xff]
    %v350 = vld [vmem:[%s6 + $0x10] sm:$0xff]
    %v351 = vld [vmem:[%s6 + $0x18] sm:$0xff]
    %v352 = vld [vmem:[%s6 + $0x20] sm:$0xff]
    %v353 = vld [vmem:[%s6 + $0x28] sm:$0xff]
    %v354 = vld [vmem:[%s6 + $0x30] sm:$0xff]
    %v355 = vld [vmem:[%s6 + $0x38] sm:$0xff]
    %357 = vset.pattern.permute.xlu0 0
    %358 = vperm.xlu0 %357, %v348
    %v359 = vpop.permute.xlu0 %358
    %362 = vset.pattern.permute.xlu0 0
    %363 = vperm.xlu0 %362, %v349
    %v364 = vpop.permute.xlu0 %363
    %367 = vset.pattern.permute.xlu0 0
    %368 = vperm.xlu0 %367, %v350
    %v369 = vpop.permute.xlu0 %368
    %372 = vset.pattern.permute.xlu0 0
    %373 = vperm.xlu0 %372, %v351
    %v374 = vpop.permute.xlu0 %373
    %377 = vset.pattern.permute.xlu0 0
    %378 = vperm.xlu0 %377, %v352
    %v379 = vpop.permute.xlu0 %378
    %382 = vset.pattern.permute.xlu0 0
    %383 = vperm.xlu0 %382, %v353
    %v384 = vpop.permute.xlu0 %383
    %387 = vset.pattern.permute.xlu0 0
    %388 = vperm.xlu0 %387, %v354
    %v389 = vpop.permute.xlu0 %388
    %392 = vset.pattern.permute.xlu0 0
    %393 = vperm.xlu0 %392, %v355
    %v394 = vpop.permute.xlu0 %393
    %v404 = vunpack.c.l.b16 %v336
    %v405 = vunpack.c.l.b16 %v337
    %v406 = vunpack.c.l.b16 %v338
    %v407 = vunpack.c.l.b16 %v339
    %v408 = vunpack.c.l.b16 %v340
    %v409 = vunpack.c.l.b16 %v341
    %v410 = vunpack.c.l.b16 %v342
    %v411 = vunpack.c.l.b16 %v343
    %v412 = vpack.c.b16 %v405, %v404
    %v413 = vpack.c.b16 %v407, %v406
    %v414 = vpack.c.b16 %v409, %v408
    %v415 = vpack.c.b16 %v411, %v410
    %vm416 = vcmask 523264
    %v418 = vsel %vm416, %v412, 0
    %v421 = vsel %vm416, %v413, 0
    %v424 = vsel %vm416, %v414, 0
    %v427 = vsel %vm416, %v415, 0
    %429 = vmatprep.subr.bf16.mxu0 0
    %430 = vmatpush1.bf16.msra.mxu0 0
    %431 = vmatprep.subr.bf16.mxu0 0
    %432 = vmatpush1.bf16.msra.mxu0 0
    %433 = vmatprep.subr.bf16.mxu0 0
    %434 = vmatpush1.bf16.msra.mxu0 0
    %435 = vmatprep.subr.bf16.mxu0 0
    %436 = vmatpush1.bf16.msra.mxu0 0
    %437 = vmatprep.subr.bf16.mxu0 0
    %438 = vmatpush1.bf16.msra.mxu0 %v347
    %439 = vmatprep.subr.bf16.mxu0 0
    %440 = vmatpush1.bf16.msra.mxu0 %v346
    %441 = vmatprep.subr.bf16.mxu0 0
    %442 = vmatpush1.bf16.msra.mxu0 %v345
    %443 = vmatprep.subr.bf16.mxu0 0
    %444 = vmatpush1.bf16.msra.mxu0 %v344
    %445 = vmatprep.subr.bf16.mxu0 0
    %446 = vmatpush2.bf16.msra.mxu0 0
    %447 = vmatprep.subr.bf16.mxu0 0
    %448 = vmatpush2.bf16.msra.mxu0 0
    %449 = vmatprep.subr.bf16.mxu0 0
    %450 = vmatpush2.bf16.msra.mxu0 0
    %451 = vmatprep.subr.bf16.mxu0 0
    %452 = vmatpush2.bf16.msra.mxu0 0
    %453 = vmatprep.subr.bf16.mxu0 0
    %454 = vmatpush2.bf16.msra.mxu0 0
    %455 = vmatprep.subr.bf16.mxu0 0
    %456 = vmatpush2.bf16.msra.mxu0 0
    %457 = vmatprep.subr.bf16.mxu0 0
    %458 = vmatpush2.bf16.msra.mxu0 0
    %459 = vmatprep.subr.bf16.mxu0 0
    %460 = vmatpush2.bf16.msra.mxu0 0
    %461 = vmatprep.mubr.bf16.mxu0 0
    %462 = vmatmul.mubr.bf16.gmra.mxu0 %v418
    %v463 = vpop.f32.mrf.mxu0
    %v464 = vadd.f32 %v359, %v463
    %v465 = vpop.f32.mrf.mxu0
    %v466 = vpop.f32.mrf.mxu0
    %v467 = vadd.f32 %v364, %v466
    %v468 = vpop.f32.mrf.mxu0
    %469 = vmatprep.mubr.bf16.mxu0 0
    %470 = vmatmul.mubr.bf16.gmra.mxu0 %v421
    %v471 = vpop.f32.mrf.mxu0
    %v472 = vadd.f32 %v369, %v471
    %v473 = vpop.f32.mrf.mxu0
    %v474 = vpop.f32.mrf.mxu0
    %v475 = vadd.f32 %v374, %v474
    %v476 = vpop.f32.mrf.mxu0
    %477 = vmatprep.mubr.bf16.mxu0 0
    %478 = vmatmul.mubr.bf16.gmra.mxu0 %v424
    %v479 = vpop.f32.mrf.mxu0
    %v480 = vadd.f32 %v379, %v479
    %v481 = vpop.f32.mrf.mxu0
    %v482 = vpop.f32.mrf.mxu0
    %v483 = vadd.f32 %v384, %v482
    %v484 = vpop.f32.mrf.mxu0
    %485 = vmatprep.mubr.bf16.mxu0 0
    %486 = vmatmul.mubr.bf16.gmra.mxu0 %v427
    %v487 = vpop.f32.mrf.mxu0
    %v488 = vadd.f32 %v389, %v487
    %v489 = vpop.f32.mrf.mxu0
    %v490 = vpop.f32.mrf.mxu0
    %v491 = vadd.f32 %v394, %v490
    %v492 = vpop.f32.mrf.mxu0
    %493 = vdwg.mxu0
    %v494 = vmax.f32 %v464, 0.0
    %v495 = vmax.f32 %v467, 0.0
    %v496 = vmax.f32 %v472, 0.0
    %v497 = vmax.f32 %v475, 0.0
    %v498 = vmax.f32 %v480, 0.0
    %v499 = vmax.f32 %v483, 0.0
    %v500 = vmax.f32 %v488, 0.0
    %v501 = vmax.f32 %v491, 0.0
    %v502 = vld [vmem:[%s7] sm:$0x1]
    %v503 = vld [vmem:[#allocation2] sm:$0x1]
    %505 = vset.pattern.permute.xlu0 0
    %506 = vperm.xlu0 %505, %v503
    %v507 = vpop.permute.xlu0 %506
    %v509 = vlaneseq
    %v510 = vshrl.u32 %v509, 7
    %v511 = vsub.s32 0, %v510
    %v512 = vrot.slane %v507, %v511
    %v514 = vsel %vm416, %v502, 0
    %516 = vmatprep.subr.mxu0 0.0
    %517 = vmatpush1.msra.mxu0 0.0
    %518 = vmatprep.subr.mxu0 0.0
    %519 = vmatpush1.msra.mxu0 0.0
    %520 = vmatprep.subr.mxu0 0.0
    %521 = vmatpush1.msra.mxu0 0.0
    %522 = vmatprep.subr.mxu0 0.0
    %523 = vmatpush1.msra.mxu0 0.0
    %524 = vmatprep.subr.mxu0 0.0
    %525 = vmatpush1.msra.mxu0 0.0
    %526 = vmatprep.subr.mxu0 0.0
    %527 = vmatpush1.msra.mxu0 0.0
    %528 = vmatprep.subr.mxu0 0.0
    %529 = vmatpush1.msra.mxu0 0.0
    %530 = vmatprep.subr.mxu0 0.0
    %531 = vmatpush1.msra.mxu0 0.0
    %532 = vmatprep.subr.mxu0 0.0
    %533 = vmatpush1.msra.mxu0 %v501
    %534 = vmatprep.subr.mxu0 0.0
    %535 = vmatpush1.msra.mxu0 %v500
    %536 = vmatprep.subr.mxu0 0.0
    %537 = vmatpush1.msra.mxu0 %v499
    %538 = vmatprep.subr.mxu0 0.0
    %539 = vmatpush1.msra.mxu0 %v498
    %540 = vmatprep.subr.mxu0 0.0
    %541 = vmatpush1.msra.mxu0 %v497
    %542 = vmatprep.subr.mxu0 0.0
    %543 = vmatpush1.msra.mxu0 %v496
    %544 = vmatprep.subr.mxu0 0.0
    %545 = vmatpush1.msra.mxu0 %v495
    %546 = vmatprep.subr.mxu0 0.0
    %547 = vmatpush1.msra.mxu0 %v494
    %548 = vmatprep.subr.mxu0 0.0
    %549 = vmatpush2.msra.mxu0 0.0
    %550 = vmatprep.subr.mxu0 0.0
    %551 = vmatpush2.msra.mxu0 0.0
    %552 = vmatprep.subr.mxu0 0.0
    %553 = vmatpush2.msra.mxu0 0.0
    %554 = vmatprep.subr.mxu0 0.0
    %555 = vmatpush2.msra.mxu0 0.0
    %556 = vmatprep.subr.mxu0 0.0
    %557 = vmatpush2.msra.mxu0 0.0
    %558 = vmatprep.subr.mxu0 0.0
    %559 = vmatpush2.msra.mxu0 0.0
    %560 = vmatprep.subr.mxu0 0.0
    %561 = vmatpush2.msra.mxu0 0.0
    %562 = vmatprep.subr.mxu0 0.0
    %563 = vmatpush2.msra.mxu0 0.0
    %564 = vmatprep.subr.mxu0 0.0
    %565 = vmatpush2.msra.mxu0 0.0
    %566 = vmatprep.subr.mxu0 0.0
    %567 = vmatpush2.msra.mxu0 0.0
    %568 = vmatprep.subr.mxu0 0.0
    %569 = vmatpush2.msra.mxu0 0.0
    %570 = vmatprep.subr.mxu0 0.0
    %571 = vmatpush2.msra.mxu0 0.0
    %572 = vmatprep.subr.mxu0 0.0
    %573 = vmatpush2.msra.mxu0 0.0
    %574 = vmatprep.subr.mxu0 0.0
    %575 = vmatpush2.msra.mxu0 0.0
    %576 = vmatprep.subr.mxu0 0.0
    %577 = vmatpush2.msra.mxu0 0.0
    %578 = vmatprep.subr.mxu0 0.0
    %579 = vmatpush2.msra.mxu0 0.0
    %580 = vmatprep.mubr.f32.mxu0 0.0
    %581 = vmatmul.mubr.f32.gmra.mxu0 %v514
    %v582 = vpop.f32.mrf.mxu0
    %v583 = vadd.f32 %v512, %v582
    %v584 = vpop.f32.mrf.mxu0
    %585 = vdwg.mxu0
    %586 = vst [vmem:[#allocation3] sm:$0x1] %v583
    // Predicated region
    $region38: #{tpu_custom_call.1} parent=1 // pred_check
      _
    $region39: #{tpu_custom_call.1} parent=1 // pred_check_branch
      %588 = sbr.rel (0) target = $region41
    $region40: #{tpu_custom_call.1} parent=1 // pred_region
      %s590 = ssub.s32 16, 16
      %591 = vsyncadd [#allocation4], %s590
      %s593 = sshll.u32 [#allocation3], 4
      %s594 = int_to_ptr.vmem [resolvable:$true] %s593
      %596 = dma.vmem_to_hbm [thread:$0]  %s594, 16, %s9, [#allocation4]
    $region41: #{tpu_custom_call.1} parent=1 // pred_fallthru
      _
    // Predicated region
    $region42: #{tpu_custom_call.1} parent=1 // pred_check
      _
    $region43: #{tpu_custom_call.1} parent=1 // pred_check_branch
      %598 = sbr.rel (0) target = $region45
    $region44: #{tpu_custom_call.1} parent=1 // pred_region
      %599 = dma.done [#allocation4], 16
    $region45: #{tpu_custom_call.1} parent=1 // pred_fallthru
      _
    %600 = vsyncpa [#allocation4], 1

</llo_original>
